<compile_context>
chip_gen: v6e
topology: v6e:2x2x1
jax: 0.10.0
libtpu: 0.0.40
codegen_flags: <defaults>
</compile_context>

<pallas_src>
import functools

import jax
import jax.numpy as jnp
from jax import lax
from jax.experimental import pallas as pl
from jax.experimental.pallas import tpu as pltpu

ALPHA = 0.8978238833058
INV_ALPHA = 1.0 / ALPHA
IN_F, HID_F, OUT_F = 17, 22, 9

_VMEM_LIMIT = 48 * 1024 * 1024  # > v5e's 16 MiB default, < v7x's 64 MiB/TC


def _celu(x):
    # CELU(x) = x (x > 0), else alpha * (exp(x / alpha) - 1).
    # Clamp the exp argument at 0 so the discarded branch never produces inf;
    # exp goes to the EUP (free slot), the rest is a short lane-dense VPU chain.
    neg = jnp.minimum(x, 0.0)
    return jnp.where(x > 0, x, ALPHA * (jnp.exp(neg * INV_ALPHA) - 1.0))


# --------------------------------------------------------------------------
# Kernels (all elementwise work is lane-dense: batch on the lane axis)
# --------------------------------------------------------------------------
def _kernel_t(xt_ref, w1t_ref, b1t_ref, w2t_ref, b2t_ref, ot_ref):
    # xt_ref: (IN_F, tb) -- batch already on the lane axis (copy-free layout).
    x_t = xt_ref[...].astype(jnp.float32)
    h = jnp.dot(w1t_ref[...], x_t, preferred_element_type=jnp.float32)
    h = _celu(h + b1t_ref[...])                                   # (HID_F, tb)
    y = jnp.dot(w2t_ref[...], h, preferred_element_type=jnp.float32)
    y = _celu(y + b2t_ref[...])                                   # (OUT_F, tb)
    ot_ref[...] = y.astype(ot_ref.dtype)                          # lane-dense stores


def _kernel_nat_in(x_ref, w1t_ref, b1t_ref, w2t_ref, b2t_ref, ot_ref):
    # x_ref: (tb, IN_F) -- natural PyTorch layout streamed straight from HBM.
    x = x_ref[...].astype(jnp.float32)
    # h_t[h, b] = sum_f w1t[h, f] * x[b, f]: A @ B^T on the MXU, so the big
    # activation tensor is never explicitly transposed and the CELU chain runs
    # lane-dense.
    h = lax.dot_general(w1t_ref[...], x, (((1,), (1,)), ((), ())),
                        preferred_element_type=jnp.float32)       # (HID_F, tb)
    h = _celu(h + b1t_ref[...])
    y = jnp.dot(w2t_ref[...], h, preferred_element_type=jnp.float32)
    y = _celu(y + b2t_ref[...])                                   # (OUT_F, tb)
    ot_ref[...] = y.astype(ot_ref.dtype)


# --------------------------------------------------------------------------
# Wrappers
# --------------------------------------------------------------------------
def _round_up(n, m):
    return ((n + m - 1) // m) * m


def _pick_tile(b, tb_max, *, min_steps=4, floor=512):
    """Batch tile: multiple of 128 (or the whole batch when it is small),
    capped so the grid keeps >= min_steps pipelined steps for large batches."""
    if b <= floor:
        return b                      # single block == full dim (always legal)
    tb = min(tb_max, _round_up(pl.cdiv(b, min_steps), 128))
    tb = max(tb, floor)
    return min(tb, _round_up(b, 128))


def _prep_params(w1, b1, w2, b2):
    # Tiny one-time reshapes; these stay resident in VMEM across grid steps.
    w1t = jnp.transpose(w1).astype(jnp.float32)          # (HID_F, IN_F)
    w2t = jnp.transpose(w2).astype(jnp.float32)          # (OUT_F, HID_F)
    b1t = jnp.reshape(b1, (HID_F, 1)).astype(jnp.float32)
    b2t = jnp.reshape(b2, (OUT_F, 1)).astype(jnp.float32)
    return w1t, b1t, w2t, b2t


def _cost_estimate(b, itemsize):
    param_bytes = 4 * (IN_F * HID_F + HID_F + HID_F * OUT_F + OUT_F)
    return pl.CostEstimate(
        flops=2 * b * (IN_F * HID_F + HID_F * OUT_F),
        transcendentals=b * (HID_F + OUT_F),
        bytes_accessed=b * (IN_F + OUT_F) * int(itemsize) + param_bytes,
    )


@functools.partial(jax.jit, static_argnames=("tb_max",))
def nn_first_layer_t(xt, w1, b1, w2, b2, *, tb_max=32768):
    """Copy-free path: xt is (17, B) (batch on the last axis) -> (9, B).

    Preferred when the surrounding CVAE layers keep the transposed (F, B)
    layout end-to-end: zero layout passes, HBM touched exactly once/element."""
    in_f, B = xt.shape
    assert in_f == IN_F
    w1t, b1t, w2t, b2t = _prep_params(w1, b1, w2, b2)
    tb = _pick_tile(B, tb_max)
    grid = (pl.cdiv(B, tb),)
    return pl.pallas_call(
        _kernel_t,
        out_shape=jax.ShapeDtypeStruct((OUT_F, B), xt.dtype),
        grid=grid,
        in_specs=[
            pl.BlockSpec((IN_F, tb), lambda i: (0, i)),      # pipelined x tile
            pl.BlockSpec((HID_F, IN_F), lambda i: (0, 0)),   # resident weights
            pl.BlockSpec((HID_F, 1), lambda i: (0, 0)),
            pl.BlockSpec((OUT_F, HID_F), lambda i: (0, 0)),
            pl.BlockSpec((OUT_F, 1), lambda i: (0, 0)),
        ],
        out_specs=pl.BlockSpec((OUT_F, tb), lambda i: (0, i)),
        compiler_params=pltpu.CompilerParams(
            dimension_semantics=("parallel",),
            vmem_limit_bytes=_VMEM_LIMIT,
        ),
        cost_estimate=_cost_estimate(B, xt.dtype.itemsize),
    )(xt, w1t, b1t, w2t, b2t)


@functools.partial(jax.jit, static_argnames=("tb_max",))
def nn_first_layer(x, w1, b1, w2, b2, *, tb_max=16384):
    """PyTorch-layout path: x is (B, 17) -> (B, 9).

    x streams in its natural HBM layout (no wrapper transpose / pad); the
    kernel writes a lane-dense (9, B) slab which is flipped back by a single
    XLA transpose over the smallest tensor."""
    B, in_f = x.shape
    assert in_f == IN_F
    w1t, b1t, w2t, b2t = _prep_params(w1, b1, w2, b2)
    tb = _pick_tile(B, tb_max)
    grid = (pl.cdiv(B, tb),)
    yt = pl.pallas_call(
        _kernel_nat_in,
        out_shape=jax.ShapeDtypeStruct((OUT_F, B), x.dtype),
        grid=grid,
        in_specs=[
            pl.BlockSpec((tb, IN_F), lambda i: (i, 0)),      # pipelined x tile
            pl.BlockSpec((HID_F, IN_F), lambda i: (0, 0)),   # resident weights
            pl.BlockSpec((HID_F, 1), lambda i: (0, 0)),
            pl.BlockSpec((OUT_F, HID_F), lambda i: (0, 0)),
            pl.BlockSpec((OUT_F, 1), lambda i: (0, 0)),
        ],
        out_specs=pl.BlockSpec((OUT_F, tb), lambda i: (0, i)),
        compiler_params=pltpu.CompilerParams(
            dimension_semantics=("parallel",),
            vmem_limit_bytes=_VMEM_LIMIT,
        ),
        cost_estimate=_cost_estimate(B, x.dtype.itemsize),
    )(x, w1t, b1t, w2t, b2t)
    # TODO(synk): keep the (9, B) layout downstream in the CVAE (use
    # nn_first_layer_t) to drop this final layout pass as well.
    return jnp.transpose(yt)


# --------------------------------------------------------------------------
# Reference + test
# --------------------------------------------------------------------------
def init_params(key):
    # PyTorch nn.Linear default init: U(-1/sqrt(fan_in), 1/sqrt(fan_in)).
    k1, k2, k3, k4 = jax.random.split(key, 4)
    bound1 = 1.0 / jnp.sqrt(float(IN_F))
    bound2 = 1.0 / jnp.sqrt(float(HID_F))
    w1 = jax.random.uniform(k1, (IN_F, HID_F), jnp.float32, -bound1, bound1)
    b1 = jax.random.uniform(k2, (1, HID_F), jnp.float32, -bound1, bound1)
    w2 = jax.random.uniform(k3, (HID_F, OUT_F), jnp.float32, -bound2, bound2)
    b2 = jax.random.uniform(k4, (1, OUT_F), jnp.float32, -bound2, bound2)
    return w1, b1, w2, b2


def reference(x, w1, b1, w2, b2):
    h = _celu(x @ w1 + b1)
    return _celu(h @ w2 + b2)


if __name__ == "__main__":
    key = jax.random.PRNGKey(0)
    kx, kx2, kp = jax.random.split(key, 3)
    w1, b1, w2, b2 = init_params(kp)

    # Small PyTorch-layout check: (B, 17) -> (B, 9).
    B = 8
    x = jax.random.normal(kx, (B, IN_F), jnp.float32)
    out = jax.block_until_ready(nn_first_layer(x, w1, b1, w2, b2))
    ref = reference(x, w1, b1, w2, b2)
    assert out.shape == (B, OUT_F)
    assert out.dtype == x.dtype
    assert jnp.allclose(out, ref, atol=2e-5, rtol=1e-5)

    # Multi-step grid with a ragged last block (no padding), PyTorch layout.
    B2 = 1000
    x2 = jax.random.normal(kx2, (B2, IN_F), jnp.float32)
    out2 = jax.block_until_ready(nn_first_layer(x2, w1, b1, w2, b2))
    ref2 = reference(x2, w1, b1, w2, b2)
    assert out2.shape == (B2, OUT_F)
    assert jnp.allclose(out2, ref2, atol=2e-5, rtol=1e-5)

    # Copy-free transposed entry point: (17, B) -> (9, B).
    out2_t = jax.block_until_ready(
        nn_first_layer_t(jnp.transpose(x2), w1, b1, w2, b2))
    assert out2_t.shape == (OUT_F, B2)
    assert jnp.allclose(jnp.transpose(out2_t), ref2, atol=2e-5, rtol=1e-5)

    print("KERNEL_OK")
</pallas_src>

<mosaic_0001>
module attributes {stable_mosaic.version = 11 : i64} {
  func.func @_kernel_nat_in(%arg0: i32, %arg1: memref<8x17xf32, #tpu.memory_space<vmem>>, %arg2: memref<22x17xf32, #tpu.memory_space<vmem>>, %arg3: memref<22x1xf32, #tpu.memory_space<vmem>>, %arg4: memref<9x22xf32, #tpu.memory_space<vmem>>, %arg5: memref<9x1xf32, #tpu.memory_space<vmem>>, %arg6: memref<9x8xf32, #tpu.memory_space<vmem>>) attributes {dimension_semantics = [#tpu.dimension_semantics<parallel>], iteration_bounds = array<i64: 1>, scalar_prefetch = 0 : i64, scratch_operands = 0 : i64, tpu.core_type = #tpu.core_type<tc>, window_params = [{transform_indices = @transform_0, window_bounds = array<i64: 8, 17>}, {pipeline_mode = #tpu.pipeline_mode<synchronous>, transform_indices = @transform_1, window_bounds = array<i64: 22, 17>}, {pipeline_mode = #tpu.pipeline_mode<synchronous>, transform_indices = @transform_2, window_bounds = array<i64: 22, 1>}, {pipeline_mode = #tpu.pipeline_mode<synchronous>, transform_indices = @transform_3, window_bounds = array<i64: 9, 22>}, {pipeline_mode = #tpu.pipeline_mode<synchronous>, transform_indices = @transform_4, window_bounds = array<i64: 9, 1>}, {transform_indices = @transform_5, window_bounds = array<i64: 9, 8>}]} {
    %c0 = arith.constant 0 : index
    %c0_0 = arith.constant 0 : index
    %0 = vector.load %arg1[%c0, %c0_0] : memref<8x17xf32, #tpu.memory_space<vmem>>, vector<8x17xf32>
    %c0_1 = arith.constant 0 : index
    %c0_2 = arith.constant 0 : index
    %1 = vector.load %arg2[%c0_1, %c0_2] : memref<22x17xf32, #tpu.memory_space<vmem>>, vector<22x17xf32>
    %cst = arith.constant dense<0.000000e+00> : vector<22x8xf32>
    %2 = tpu.matmul %1, %0, %cst {dimension_numbers = #tpu.dot_dimension_numbers<[1], [1], [0], [0], [0, 0, 1, 0], [], []>} : vector<22x17xf32>, vector<8x17xf32>, vector<22x8xf32> -> vector<22x8xf32>
    %c0_3 = arith.constant 0 : index
    %c0_4 = arith.constant 0 : index
    %3 = vector.load %arg3[%c0_3, %c0_4] : memref<22x1xf32, #tpu.memory_space<vmem>>, vector<22x1xf32>
    %4 = vector.broadcast %3 : vector<22x1xf32> to vector<22x8xf32>
    %5 = arith.addf %2, %4 : vector<22x8xf32>
    %cst_5 = arith.constant 0.000000e+00 : f32
    %6 = vector.broadcast %cst_5 : f32 to vector<22x8xf32>
    %7 = arith.minimumf %5, %6 : vector<22x8xf32>
    %cst_6 = arith.constant 0.000000e+00 : f32
    %8 = vector.broadcast %cst_6 : f32 to vector<22x8xf32>
    %9 = arith.cmpf ogt, %5, %8 : vector<22x8xf32>
    %cst_7 = arith.constant 1.11380422 : f32
    %10 = vector.broadcast %cst_7 : f32 to vector<22x8xf32>
    %11 = arith.mulf %7, %10 : vector<22x8xf32>
    %12 = math.exp %11 : vector<22x8xf32>
    %cst_8 = arith.constant 1.000000e+00 : f32
    %13 = vector.broadcast %cst_8 : f32 to vector<22x8xf32>
    %14 = arith.subf %12, %13 : vector<22x8xf32>
    %cst_9 = arith.constant 0.89782387 : f32
    %15 = vector.broadcast %cst_9 : f32 to vector<22x8xf32>
    %16 = arith.mulf %15, %14 : vector<22x8xf32>
    %17 = arith.select %9, %5, %16 : vector<22x8xi1>, vector<22x8xf32>
    %c0_10 = arith.constant 0 : index
    %c0_11 = arith.constant 0 : index
    %18 = vector.load %arg4[%c0_10, %c0_11] : memref<9x22xf32, #tpu.memory_space<vmem>>, vector<9x22xf32>
    %cst_12 = arith.constant dense<0.000000e+00> : vector<9x8xf32>
    %19 = tpu.matmul %18, %17, %cst_12 {dimension_numbers = #tpu.dot_dimension_numbers<[1], [0], [0], [1], [0, 0, 1, 1], [], []>} : vector<9x22xf32>, vector<22x8xf32>, vector<9x8xf32> -> vector<9x8xf32>
    %c0_13 = arith.constant 0 : index
    %c0_14 = arith.constant 0 : index
    %20 = vector.load %arg5[%c0_13, %c0_14] : memref<9x1xf32, #tpu.memory_space<vmem>>, vector<9x1xf32>
    %21 = vector.broadcast %20 : vector<9x1xf32> to vector<9x8xf32>
    %22 = arith.addf %19, %21 : vector<9x8xf32>
    %cst_15 = arith.constant 0.000000e+00 : f32
    %23 = vector.broadcast %cst_15 : f32 to vector<9x8xf32>
    %24 = arith.minimumf %22, %23 : vector<9x8xf32>
    %cst_16 = arith.constant 0.000000e+00 : f32
    %25 = vector.broadcast %cst_16 : f32 to vector<9x8xf32>
    %26 = arith.cmpf ogt, %22, %25 : vector<9x8xf32>
    %cst_17 = arith.constant 1.11380422 : f32
    %27 = vector.broadcast %cst_17 : f32 to vector<9x8xf32>
    %28 = arith.mulf %24, %27 : vector<9x8xf32>
    %29 = math.exp %28 : vector<9x8xf32>
    %cst_18 = arith.constant 1.000000e+00 : f32
    %30 = vector.broadcast %cst_18 : f32 to vector<9x8xf32>
    %31 = arith.subf %29, %30 : vector<9x8xf32>
    %cst_19 = arith.constant 0.89782387 : f32
    %32 = vector.broadcast %cst_19 : f32 to vector<9x8xf32>
    %33 = arith.mulf %32, %31 : vector<9x8xf32>
    %34 = arith.select %26, %22, %33 : vector<9x8xi1>, vector<9x8xf32>
    %c0_20 = arith.constant 0 : index
    %c0_21 = arith.constant 0 : index
    %35 = vector.load %arg6[%c0_20, %c0_21] : memref<9x8xf32, #tpu.memory_space<vmem>>, vector<9x8xf32>
    tpu.vector_store %arg6[%c0_20, %c0_21], %34 {strides = array<i32>} : memref<9x8xf32, #tpu.memory_space<vmem>>, vector<9x8xf32>,
    return
  }
  func.func @transform_0(%arg0: i32) -> (i32, i32) {
    %c0_i32 = arith.constant 0 : i32
    %c0_i32_0 = arith.constant 0 : i32
    return %arg0, %c0_i32 : i32, i32
  }
  func.func @transform_1(%arg0: i32) -> (i32, i32) {
    %c0_i32 = arith.constant 0 : i32
    %c0_i32_0 = arith.constant 0 : i32
    %c0_i32_1 = arith.constant 0 : i32
    return %c0_i32, %c0_i32_0 : i32, i32
  }
  func.func @transform_2(%arg0: i32) -> (i32, i32) {
    %c0_i32 = arith.constant 0 : i32
    %c0_i32_0 = arith.constant 0 : i32
    %c0_i32_1 = arith.constant 0 : i32
    return %c0_i32, %c0_i32_0 : i32, i32
  }
  func.func @transform_3(%arg0: i32) -> (i32, i32) {
    %c0_i32 = arith.constant 0 : i32
    %c0_i32_0 = arith.constant 0 : i32
    %c0_i32_1 = arith.constant 0 : i32
    return %c0_i32, %c0_i32_0 : i32, i32
  }
  func.func @transform_4(%arg0: i32) -> (i32, i32) {
    %c0_i32 = arith.constant 0 : i32
    %c0_i32_0 = arith.constant 0 : i32
    %c0_i32_1 = arith.constant 0 : i32
    return %c0_i32, %c0_i32_0 : i32, i32
  }
  func.func @transform_5(%arg0: i32) -> (i32, i32) {
    %c0_i32 = arith.constant 0 : i32
    %c0_i32_0 = arith.constant 0 : i32
    return %c0_i32, %arg0 : i32, i32
  }
}

</mosaic_0001>

<llo_original>
// kernel: nn_first_layer.1
$region0: #{nn_first_layer.1}
  #allocation0 [shape = 'u32[]', space=smem, size = 0x4, offset = 0x4, fixed_abs, tag = 'smem constant byte address 0x4 - core index']
  #allocation1 [shape = 'u32[144,128]{1,0:T(1,128)}', space=vmem, size = 0x12000, scoped, tag = 'internal scratch']
  %s0 = inlined_call_operand.vmem [shape: f32[8,17], index: 0, kind: input, shape index: {}]
  %s1 = inlined_call_operand.vmem [shape: f32[22,17], index: 1, kind: input, shape index: {}]
  %s2 = inlined_call_operand.vmem [shape: f32[22,1], index: 2, kind: input, shape index: {}]
  %s3 = inlined_call_operand.vmem [shape: f32[9,22], index: 3, kind: input, shape index: {}]
  %s4 = inlined_call_operand.vmem [shape: f32[9,1], index: 4, kind: input, shape index: {}]
  %s5 = inlined_call_operand.vmem [shape: f32[9,8], index: 5, kind: output, shape index: {}]
  %s6 = sld [smem:[#allocation0]]
  $region30: #{nn_first_layer.1} parent=0
    _
  %s8 = ssub.s32 1, %s6
  %s9 = scalar_select 0, %s8, %s6
  // Predicated region
  $region2: #{nn_first_layer.1} parent=0 // pred_check
    _
  $region3: #{nn_first_layer.1} parent=0 // pred_check_branch
    %11 = sbr.rel (0) target = $region5
  $region4: #{nn_first_layer.1} parent=0 // pred_region
    _
  $region5: #{nn_first_layer.1} parent=0 // pred_fallthru
    _
  // Predicated region
  $region6: #{nn_first_layer.1} parent=0 // pred_check
    _
  $region7: #{nn_first_layer.1} parent=0 // pred_check_branch
    %13 = sbr.rel (0) target = $region9
  $region8: #{nn_first_layer.1} parent=0 // pred_region
    _
  $region9: #{nn_first_layer.1} parent=0 // pred_fallthru
    _
  // Predicated region
  $region10: #{nn_first_layer.1} parent=0 // pred_check
    _
  $region11: #{nn_first_layer.1} parent=0 // pred_check_branch
    %15 = sbr.rel (0) target = $region13
  $region12: #{nn_first_layer.1} parent=0 // pred_region
    _
  $region13: #{nn_first_layer.1} parent=0 // pred_fallthru
    _
  // Predicated region
  $region14: #{nn_first_layer.1} parent=0 // pred_check
    _
  $region15: #{nn_first_layer.1} parent=0 // pred_check_branch
    %17 = sbr.rel (0) target = $region17
  $region16: #{nn_first_layer.1} parent=0 // pred_region
    _
  $region17: #{nn_first_layer.1} parent=0 // pred_fallthru
    _
  // Predicated region
  $region18: #{nn_first_layer.1} parent=0 // pred_check
    _
  $region19: #{nn_first_layer.1} parent=0 // pred_check_branch
    %19 = sbr.rel (0) target = $region21
  $region20: #{nn_first_layer.1} parent=0 // pred_region
    _
  $region21: #{nn_first_layer.1} parent=0 // pred_fallthru
    _
  %v20 = vld [vmem:[%s0] sm:$0xff]
  %v21 = vld [vmem:[%s1] sm:$0xff]
  %v22 = vld [vmem:[%s1 + $0x8] sm:$0xff]
  %v23 = vld [vmem:[%s1 + $0x10] sm:$0x3f]
  %v24 = vld [vmem:[%s2] sm:$0xff]
  %v25 = vld [vmem:[%s2 + $0x8] sm:$0xff]
  %v26 = vld [vmem:[%s2 + $0x10] sm:$0x3f]
  %28 = vset.pattern.permute.xlu0 0
  %29 = vperm.xlu0 %28, %v24
  %v30 = vpop.permute.xlu0 %29
  %33 = vset.pattern.permute.xlu0 0
  %34 = vperm.xlu0 %33, %v25
  %v35 = vpop.permute.xlu0 %34
  %38 = vset.pattern.permute.xlu0 0
  %39 = vperm.xlu0 %38, %v26
  %v40 = vpop.permute.xlu0 %39
  %vm42 = vcmask 138240
  %v44 = vsel %vm42, %v21, 0
  %v47 = vsel %vm42, %v22, 0
  %v50 = vsel %vm42, %v23, 0
  %v53 = vsel %vm42, %v20, 0
  %55 = vmatprep.subr.mxu0 0.0
  %56 = vmatpush1.xpose.msra.mxu0 0.0
  %57 = vmatprep.subr.mxu0 0.0
  %58 = vmatpush1.xpose.msra.mxu0 0.0
  %59 = vmatprep.subr.mxu0 0.0
  %60 = vmatpush1.xpose.msra.mxu0 0.0
  %61 = vmatprep.subr.mxu0 0.0
  %62 = vmatpush1.xpose.msra.mxu0 0.0
  %63 = vmatprep.subr.mxu0 0.0
  %64 = vmatpush1.xpose.msra.mxu0 0.0
  %65 = vmatprep.subr.mxu0 0.0
  %66 = vmatpush1.xpose.msra.mxu0 0.0
  %67 = vmatprep.subr.mxu0 0.0
  %68 = vmatpush1.xpose.msra.mxu0 0.0
  %69 = vmatprep.subr.mxu0 0.0
  %70 = vmatpush1.xpose.msra.mxu0 0.0
  %71 = vmatprep.subr.mxu0 0.0
  %72 = vmatpush1.xpose.msra.mxu0 0.0
  %73 = vmatprep.subr.mxu0 0.0
  %74 = vmatpush1.xpose.msra.mxu0 0.0
  %75 = vmatprep.subr.mxu0 0.0
  %76 = vmatpush1.xpose.msra.mxu0 0.0
  %77 = vmatprep.subr.mxu0 0.0
  %78 = vmatpush1.xpose.msra.mxu0 0.0
  %79 = vmatprep.subr.mxu0 0.0
  %80 = vmatpush1.xpose.msra.mxu0 0.0
  %81 = vmatprep.subr.mxu0 0.0
  %82 = vmatpush1.xpose.msra.mxu0 0.0
  %83 = vmatprep.subr.mxu0 0.0
  %84 = vmatpush1.xpose.msra.mxu0 0.0
  %85 = vmatprep.subr.mxu0 0.0
  %86 = vmatpush1.xpose.msra.mxu0 %v53
  %87 = vmatprep.subr.mxu0 0.0
  %88 = vmatpush2.xpose.msra.mxu0 0.0
  %89 = vmatprep.subr.mxu0 0.0
  %90 = vmatpush2.xpose.msra.mxu0 0.0
  %91 = vmatprep.subr.mxu0 0.0
  %92 = vmatpush2.xpose.msra.mxu0 0.0
  %93 = vmatprep.subr.mxu0 0.0
  %94 = vmatpush2.xpose.msra.mxu0 0.0
  %95 = vmatprep.subr.mxu0 0.0
  %96 = vmatpush2.xpose.msra.mxu0 0.0
  %97 = vmatprep.subr.mxu0 0.0
  %98 = vmatpush2.xpose.msra.mxu0 0.0
  %99 = vmatprep.subr.mxu0 0.0
  %100 = vmatpush2.xpose.msra.mxu0 0.0
  %101 = vmatprep.subr.mxu0 0.0
  %102 = vmatpush2.xpose.msra.mxu0 0.0
  %103 = vmatprep.subr.mxu0 0.0
  %104 = vmatpush2.xpose.msra.mxu0 0.0
  %105 = vmatprep.subr.mxu0 0.0
  %106 = vmatpush2.xpose.msra.mxu0 0.0
  %107 = vmatprep.subr.mxu0 0.0
  %108 = vmatpush2.xpose.msra.mxu0 0.0
  %109 = vmatprep.subr.mxu0 0.0
  %110 = vmatpush2.xpose.msra.mxu0 0.0
  %111 = vmatprep.subr.mxu0 0.0
  %112 = vmatpush2.xpose.msra.mxu0 0.0
  %113 = vmatprep.subr.mxu0 0.0
  %114 = vmatpush2.xpose.msra.mxu0 0.0
  %115 = vmatprep.subr.mxu0 0.0
  %116 = vmatpush2.xpose.msra.mxu0 0.0
  %117 = vmatprep.subr.mxu0 0.0
  %118 = vmatpush2.xpose.msra.mxu0 0.0
  %119 = vmatprep.mubr.f32.mxu0 0.0
  %120 = vmatmul.mubr.f32.gmra.mxu0 %v44
  %v121 = vpop.f32.mrf.mxu0
  %v122 = vadd.f32 %v30, %v121
  %v123 = vpop.f32.mrf.mxu0
  %124 = vmatprep.mubr.f32.mxu0 0.0
  %125 = vmatmul.mubr.f32.gmra.mxu0 %v47
  %v126 = vpop.f32.mrf.mxu0
  %v127 = vadd.f32 %v35, %v126
  %v128 = vpop.f32.mrf.mxu0
  %129 = vmatprep.mubr.f32.mxu0 0.0
  %130 = vmatmul.mubr.f32.gmra.mxu0 %v50
  %v131 = vpop.f32.mrf.mxu0
  %v132 = vadd.f32 %v40, %v131
  %v133 = vpop.f32.mrf.mxu0
  %134 = vdwg.mxu0
  %v135 = vmin.f32 %v122, 0.0
  %v136 = vmin.f32 %v127, 0.0
  %v137 = vmin.f32 %v132, 0.0
  %vm138 = vcmp.gt.f32.partialorder %v122, 0.0
  %vm139 = vcmp.gt.f32.partialorder %v127, 0.0
  %vm140 = vcmp.gt.f32.partialorder %v132, 0.0
  %v141 = vmul.f32 %v135, 1.1138042
  %v142 = vmul.f32 %v136, 1.1138042
  %v143 = vmul.f32 %v137, 1.1138042
  %v144 = vmul.f32 %v141, 1.442695
  %v145 = vpow.pop %v144
  %v146 = vmul.f32 %v142, 1.442695
  %v147 = vpow.pop %v146
  %v148 = vmul.f32 %v143, 1.442695
  %v149 = vpow.pop %v148
  %v150 = vsub.f32 %v145, 1.0
  %v151 = vsub.f32 %v147, 1.0
  %v152 = vsub.f32 %v149, 1.0
  %v153 = vmul.f32 %v150, 0.89782387
  %v154 = vmul.f32 %v151, 0.89782387
  %v155 = vmul.f32 %v152, 0.89782387
  %v156 = vsel %vm138, %v122, %v153
  %v157 = vsel %vm139, %v127, %v154
  %v158 = vsel %vm140, %v132, %v155
  %v159 = vld [vmem:[%s3] sm:$0xff]
  %v160 = vld [vmem:[%s3 + $0x8] sm:$0x1]
  %v161 = vld [vmem:[%s4] sm:$0xff]
  %v162 = vld [vmem:[%s4 + $0x8] sm:$0x1]
  %164 = vset.pattern.permute.xlu0 0
  %165 = vperm.xlu0 %164, %v161
  %v166 = vpop.permute.xlu0 %165
  %169 = vset.pattern.permute.xlu0 0
  %170 = vperm.xlu0 %169, %v162
  %v171 = vpop.permute.xlu0 %170
  %vm173 = vcmask 179200
  %v175 = vsel %vm173, %v159, 0
  %v178 = vsel %vm173, %v160, 0
  %vm180 = vcmask 1045504
  %v182 = vsel %vm180, %v158, 0
  %184 = vmatprep.subr.mxu0 0.0
  %185 = vmatpush1.msra.mxu0 0.0
  %186 = vmatprep.subr.mxu0 0.0
  %187 = vmatpush1.msra.mxu0 0.0
  %188 = vmatprep.subr.mxu0 0.0
  %189 = vmatpush1.msra.mxu0 0.0
  %190 = vmatprep.subr.mxu0 0.0
  %191 = vmatpush1.msra.mxu0 0.0
  %192 = vmatprep.subr.mxu0 0.0
  %193 = vmatpush1.msra.mxu0 0.0
  %194 = vmatprep.subr.mxu0 0.0
  %195 = vmatpush1.msra.mxu0 0.0
  %196 = vmatprep.subr.mxu0 0.0
  %197 = vmatpush1.msra.mxu0 0.0
  %198 = vmatprep.subr.mxu0 0.0
  %199 = vmatpush1.msra.mxu0 0.0
  %200 = vmatprep.subr.mxu0 0.0
  %201 = vmatpush1.msra.mxu0 0.0
  %202 = vmatprep.subr.mxu0 0.0
  %203 = vmatpush1.msra.mxu0 0.0
  %204 = vmatprep.subr.mxu0 0.0
  %205 = vmatpush1.msra.mxu0 0.0
  %206 = vmatprep.subr.mxu0 0.0
  %207 = vmatpush1.msra.mxu0 0.0
  %208 = vmatprep.subr.mxu0 0.0
  %209 = vmatpush1.msra.mxu0 0.0
  %210 = vmatprep.subr.mxu0 0.0
  %211 = vmatpush1.msra.mxu0 %v182
  %212 = vmatprep.subr.mxu0 0.0
  %213 = vmatpush1.msra.mxu0 %v157
  %214 = vmatprep.subr.mxu0 0.0
  %215 = vmatpush1.msra.mxu0 %v156
  %216 = vmatprep.subr.mxu0 0.0
  %217 = vmatpush2.msra.mxu0 0.0
  %218 = vmatprep.subr.mxu0 0.0
  %219 = vmatpush2.msra.mxu0 0.0
  %220 = vmatprep.subr.mxu0 0.0
  %221 = vmatpush2.msra.mxu0 0.0
  %222 = vmatprep.subr.mxu0 0.0
  %223 = vmatpush2.msra.mxu0 0.0
  %224 = vmatprep.subr.mxu0 0.0
  %225 = vmatpush2.msra.mxu0 0.0
  %226 = vmatprep.subr.mxu0 0.0
  %227 = vmatpush2.msra.mxu0 0.0
  %228 = vmatprep.subr.mxu0 0.0
  %229 = vmatpush2.msra.mxu0 0.0
  %230 = vmatprep.subr.mxu0 0.0
  %231 = vmatpush2.msra.mxu0 0.0
  %232 = vmatprep.subr.mxu0 0.0
  %233 = vmatpush2.msra.mxu0 0.0
  %234 = vmatprep.subr.mxu0 0.0
  %235 = vmatpush2.msra.mxu0 0.0
  %236 = vmatprep.subr.mxu0 0.0
  %237 = vmatpush2.msra.mxu0 0.0
  %238 = vmatprep.subr.mxu0 0.0
  %239 = vmatpush2.msra.mxu0 0.0
  %240 = vmatprep.subr.mxu0 0.0
  %241 = vmatpush2.msra.mxu0 0.0
  %242 = vmatprep.subr.mxu0 0.0
  %243 = vmatpush2.msra.mxu0 0.0
  %244 = vmatprep.subr.mxu0 0.0
  %245 = vmatpush2.msra.mxu0 0.0
  %246 = vmatprep.subr.mxu0 0.0
  %247 = vmatpush2.msra.mxu0 0.0
  %248 = vmatprep.mubr.f32.mxu0 0.0
  %249 = vmatmul.mubr.f32.gmra.mxu0 %v175
  %v250 = vpop.f32.mrf.mxu0
  %v251 = vadd.f32 %v166, %v250
  %v252 = vpop.f32.mrf.mxu0
  %253 = vmatprep.mubr.f32.mxu0 0.0
  %254 = vmatmul.mubr.f32.gmra.mxu0 %v178
  %v255 = vpop.f32.mrf.mxu0
  %v256 = vadd.f32 %v171, %v255
  %v257 = vpop.f32.mrf.mxu0
  %258 = vdwg.mxu0
  %v259 = vmin.f32 %v251, 0.0
  %v260 = vmin.f32 %v256, 0.0
  %vm261 = vcmp.gt.f32.partialorder %v251, 0.0
  %vm262 = vcmp.gt.f32.partialorder %v256, 0.0
  %v263 = vmul.f32 %v259, 1.1138042
  %v264 = vmul.f32 %v260, 1.1138042
  %v265 = vmul.f32 %v263, 1.442695
  %v266 = vpow.pop %v265
  %v267 = vmul.f32 %v264, 1.442695
  %v268 = vpow.pop %v267
  %v269 = vsub.f32 %v266, 1.0
  %v270 = vsub.f32 %v268, 1.0
  %v271 = vmul.f32 %v269, 0.89782387
  %v272 = vmul.f32 %v270, 0.89782387
  %v273 = vsel %vm261, %v251, %v271
  %v274 = vsel %vm262, %v256, %v272
  %vm275 = vcmask 64512
  %276 = vst.msk [vmem:[%s5] sm:$0xff] %vm275, %v273
  %vm277 = vcmask 57344
  %278 = vst.msk [vmem:[%s5 + $0x8] sm:$0x1] %vm277, %v274
  // Predicated region
  $region22: #{nn_first_layer.1} parent=0 // pred_check
    _
  $region23: #{nn_first_layer.1} parent=0 // pred_check_branch
    %280 = sbr.rel (0) target = $region25
  $region24: #{nn_first_layer.1} parent=0 // pred_region
    _
  $region25: #{nn_first_layer.1} parent=0 // pred_fallthru
    _
  // Predicated region
  $region26: #{nn_first_layer.1} parent=0 // pred_check
    _
  $region27: #{nn_first_layer.1} parent=0 // pred_check_branch
    %282 = sbr.rel (0) target = $region29
  $region28: #{nn_first_layer.1} parent=0 // pred_region
    _
  $region29: #{nn_first_layer.1} parent=0 // pred_fallthru
    _

</llo_original>
